<compile_context>
chip_gen: v7x
topology: tpu7x:2x2x1
jax: 0.10.0
libtpu: 0.0.40
codegen_flags: <defaults>
</compile_context>

<pallas_src>
import jax
import jax.numpy as jnp
from jax.experimental import pallas as pl
from jax.experimental.pallas import tpu as pltpu


def poly_attention_kernel(x_ref, w_ref, b_ref, codes_ref, bias_ref, out_ref):
    tb, S, E = x_ref.shape
    C = w_ref.shape[1]
    K = codes_ref.shape[1]

    x = x_ref[...]                                   # [tb, S, E]
    x2 = x.reshape(tb * S, E)                        # flatten for one big MXU matmul

    # projection + tanh : [tb*S, C]
    proj = jnp.tanh(
        jnp.dot(x2, w_ref[...], preferred_element_type=jnp.float32) + b_ref[...]
    )

    # attention scores against context codes : [tb*S, K] -> [tb, S, K]
    scores = jnp.dot(proj, codes_ref[...], preferred_element_type=jnp.float32)
    scores = scores.reshape(tb, S, K) + bias_ref[...].reshape(tb, S, 1)

    # softmax over the sequence axis (axis=1 here == torch dim=2 after transpose)
    m = jnp.max(scores, axis=1, keepdims=True)       # [tb, 1, K]
    e = jnp.exp(scores - m)                          # [tb, S, K]  (masked lanes underflow to 0)
    denom = jnp.sum(e, axis=1, keepdims=True)        # [tb, 1, K]
    attn = e * pl.reciprocal(denom, approx=False)    # [tb, S, K]

    # poly_repr: contract over S, batched over tb -> [tb, K, E]
    out = jax.lax.dot_general(
        attn, x,
        dimension_numbers=(((1,), (1,)), ((0,), (0,))),
        preferred_element_type=jnp.float32,
    )

    # lane-dense store: [tb, K*E]
    out_ref[...] = out.reshape(tb, K * E).astype(out_ref.dtype)


def multi_interest_user_encoder(x, w, b, codes, mask=None, block_b=None):
    """x: [B, S, E]; w: [E, C]; b: [1, C] (or [C]); codes: [C, K]; mask: [B, S] or None.

    Returns poly_repr: [B, K, E] float32.
    """
    B, S, E = x.shape
    C = w.shape[1]
    K = codes.shape[1]

    x = x.astype(jnp.float32)
    w = w.astype(jnp.float32)
    b = b.astype(jnp.float32).reshape(1, C)
    codes = codes.astype(jnp.float32)

    # Additive mask bias: 0 for valid positions, -1e30 for padded ones.
    if mask is None:
        bias = jnp.zeros((B, S), dtype=jnp.float32)
    else:
        mask_f = mask.astype(jnp.float32).reshape(B, S)
        bias = jnp.where(mask_f > 0, 0.0, -1e30).astype(jnp.float32)

    # Batch-tile size: aim for TB*S >= 256 (fills one v6e/v7x MXU pass), capped at B.
    if block_b is None:
        block_b = max(1, min(B, pl.cdiv(256, S)))

    # Pad B to a multiple of the tile; padded rows get bias 0 and x=0 -> finite output, discarded.
    Bp = pl.cdiv(B, block_b) * block_b
    if Bp != B:
        pad = Bp - B
        x = jnp.pad(x, ((0, pad), (0, 0), (0, 0)))
        bias = jnp.pad(bias, ((0, pad), (0, 0)))

    grid_spec = pltpu.PrefetchScalarGridSpec(
        num_scalar_prefetch=0,
        grid=(Bp // block_b,),
        in_specs=[
            pl.BlockSpec((block_b, S, E), lambda i: (i, 0, 0)),   # x (TB rows / step)
            pl.BlockSpec((E, C), lambda i: (0, 0)),               # projection weight (resident)
            pl.BlockSpec((1, C), lambda i: (0, 0)),               # projection bias (resident)
            pl.BlockSpec((C, K), lambda i: (0, 0)),               # context codes (resident)
            pl.BlockSpec((block_b, S), lambda i: (i, 0)),         # additive mask bias
        ],
        out_specs=pl.BlockSpec((block_b, K * E), lambda i: (i, 0)),  # lane-dense output
    )

    out_flat = pl.pallas_call(
        poly_attention_kernel,
        out_shape=jax.ShapeDtypeStruct((Bp, K * E), jnp.float32),
        grid_spec=grid_spec,
        compiler_params=pltpu.CompilerParams(
            dimension_semantics=("parallel",)
        ),
    )(x, w, b, codes, bias)

    return out_flat[:B].reshape(B, K, E)


def reference_jax(x, w, b, codes, mask=None):
    proj = jnp.tanh(jnp.einsum("bse,ec->bsc", x, w) + b[None, :, :])
    scores = jnp.einsum("bsc,ck->bsk", proj, codes)
    scores = jnp.swapaxes(scores, 1, 2)                     # [B, K, S]
    if mask is not None:
        valid = (mask[:, None, :] > 0)
        scores = jnp.where(valid, scores, -1e30)
    attn = jax.nn.softmax(scores, axis=-1)
    return jnp.einsum("bks,bse->bke", attn, x)


if __name__ == "__main__":
    # Small shapes consistent with the module's forward:
    #   news_embedding_dim E=32, n_interest_vectors K=8, query_vector_dim C=16
    B, S, E, K, C = 2, 8, 32, 8, 16

    key = jax.random.PRNGKey(0)
    k_x, k_w, k_b, k_c, k_m = jax.random.split(key, 5)

    x = jax.random.normal(k_x, (B, S, E), dtype=jnp.float32)

    # Deterministic parameter init (synthetic; matches shapes of nn.Linear(E, C)
    # and xavier_uniform context_codes [C, K] with tanh gain).
    lin_bound = 1.0 / jnp.sqrt(E)
    w = jax.random.uniform(k_w, (E, C), minval=-lin_bound, maxval=lin_bound,
                           dtype=jnp.float32)
    b = jax.random.uniform(k_b, (1, C), minval=-lin_bound, maxval=lin_bound,
                           dtype=jnp.float32)
    gain = 5.0 / 3.0  # tanh gain
    xav = gain * jnp.sqrt(6.0 / (C + K))
    codes = jax.random.uniform(k_c, (C, K), minval=-xav, maxval=xav,
                               dtype=jnp.float32)

    # Optional attention mask over clicked history (1 = valid, 0 = padded).
    mask = (jax.random.uniform(k_m, (B, S)) > 0.25).astype(jnp.float32)
    mask = mask.at[:, 0].set(1.0)  # ensure at least one valid position per batch

    # Masked path.
    out = jax.block_until_ready(multi_interest_user_encoder(x, w, b, codes, mask))
    ref = reference_jax(x, w, b, codes, mask)
    assert out.shape == (B, K, E)
    assert jnp.allclose(out, ref, atol=1e-5, rtol=1e-5)

    # mask=None path (plain softmax).
    out_nomask = jax.block_until_ready(multi_interest_user_encoder(x, w, b, codes, None))
    ref_nomask = reference_jax(x, w, b, codes, None)
    assert jnp.allclose(out_nomask, ref_nomask, atol=1e-5, rtol=1e-5)

    # Exercise the batch-tiled / padded path (B not a multiple of the tile, grid > 1).
    B2 = 5
    k_x2, k_m2 = jax.random.split(jax.random.PRNGKey(1), 2)
    x2 = jax.random.normal(k_x2, (B2, S, E), dtype=jnp.float32)
    mask2 = (jax.random.uniform(k_m2, (B2, S)) > 0.25).astype(jnp.float32)
    mask2 = mask2.at[:, 0].set(1.0)
    out2 = jax.block_until_ready(
        multi_interest_user_encoder(x2, w, b, codes, mask2, block_b=2)
    )
    ref2 = reference_jax(x2, w, b, codes, mask2)
    assert out2.shape == (B2, K, E)
    assert jnp.allclose(out2, ref2, atol=1e-5, rtol=1e-5)

    print("KERNEL_OK")
</pallas_src>

<mosaic_0001>
module attributes {stable_mosaic.version = 11 : i64} {
  func.func @poly_attention_kernel(%arg0: i32, %arg1: memref<2x8x32xf32, #tpu.memory_space<vmem>>, %arg2: memref<32x16xf32, #tpu.memory_space<vmem>>, %arg3: memref<1x16xf32, #tpu.memory_space<vmem>>, %arg4: memref<16x8xf32, #tpu.memory_space<vmem>>, %arg5: memref<2x8xf32, #tpu.memory_space<vmem>>, %arg6: memref<2x256xf32, #tpu.memory_space<vmem>>) attributes {dimension_semantics = [#tpu.dimension_semantics<parallel>], iteration_bounds = array<i64: 1>, scalar_prefetch = 0 : i64, scratch_operands = 0 : i64, tpu.core_type = #tpu.core_type<tc>, window_params = [{transform_indices = @transform_0, window_bounds = array<i64: 2, 8, 32>}, {pipeline_mode = #tpu.pipeline_mode<synchronous>, transform_indices = @transform_1, window_bounds = array<i64: 32, 16>}, {pipeline_mode = #tpu.pipeline_mode<synchronous>, transform_indices = @transform_2, window_bounds = array<i64: 1, 16>}, {pipeline_mode = #tpu.pipeline_mode<synchronous>, transform_indices = @transform_3, window_bounds = array<i64: 16, 8>}, {transform_indices = @transform_4, window_bounds = array<i64: 2, 8>}, {transform_indices = @transform_5, window_bounds = array<i64: 2, 256>}]} {
    %c0 = arith.constant 0 : index
    %c0_0 = arith.constant 0 : index
    %c0_1 = arith.constant 0 : index
    %0 = vector.load %arg1[%c0, %c0_0, %c0_1] : memref<2x8x32xf32, #tpu.memory_space<vmem>>, vector<2x8x32xf32>
    %1 = vector.shape_cast %0 : vector<2x8x32xf32> to vector<16x32xf32>
    %c0_2 = arith.constant 0 : index
    %c0_3 = arith.constant 0 : index
    %2 = vector.load %arg2[%c0_2, %c0_3] : memref<32x16xf32, #tpu.memory_space<vmem>>, vector<32x16xf32>
    %cst = arith.constant dense<0.000000e+00> : vector<16x16xf32>
    %3 = tpu.matmul %1, %2, %cst {dimension_numbers = #tpu.dot_dimension_numbers<[1], [0], [0], [1], [0, 0, 1, 1], [], []>} : vector<16x32xf32>, vector<32x16xf32>, vector<16x16xf32> -> vector<16x16xf32>
    %c0_4 = arith.constant 0 : index
    %c0_5 = arith.constant 0 : index
    %4 = vector.load %arg3[%c0_4, %c0_5] : memref<1x16xf32, #tpu.memory_space<vmem>>, vector<1x16xf32>
    %5 = vector.broadcast %4 : vector<1x16xf32> to vector<16x16xf32>
    %6 = arith.addf %3, %5 : vector<16x16xf32>
    %7 = math.tanh %6 : vector<16x16xf32>
    %c0_6 = arith.constant 0 : index
    %c0_7 = arith.constant 0 : index
    %8 = vector.load %arg4[%c0_6, %c0_7] : memref<16x8xf32, #tpu.memory_space<vmem>>, vector<16x8xf32>
    %cst_8 = arith.constant dense<0.000000e+00> : vector<16x8xf32>
    %9 = tpu.matmul %7, %8, %cst_8 {dimension_numbers = #tpu.dot_dimension_numbers<[1], [0], [0], [1], [0, 0, 1, 1], [], []>} : vector<16x16xf32>, vector<16x8xf32>, vector<16x8xf32> -> vector<16x8xf32>
    %10 = vector.shape_cast %9 : vector<16x8xf32> to vector<2x8x8xf32>
    %c0_9 = arith.constant 0 : index
    %c0_10 = arith.constant 0 : index
    %11 = vector.load %arg5[%c0_9, %c0_10] : memref<2x8xf32, #tpu.memory_space<vmem>>, vector<2x8xf32>
    %12 = vector.shape_cast %11 : vector<2x8xf32> to vector<2x8x1xf32>
    %13 = vector.broadcast %12 : vector<2x8x1xf32> to vector<2x8x8xf32>
    %14 = arith.addf %10, %13 : vector<2x8x8xf32>
    %cst_11 = arith.constant dense<0xFF800000> : vector<2x8xf32>
    %15 = vector.multi_reduction <maximumf>, %14, %cst_11 [1] : vector<2x8x8xf32> to vector<2x8xf32>
    %16 = vector.shape_cast %15 : vector<2x8xf32> to vector<2x1x8xf32>
    %17 = vector.broadcast %16 : vector<2x1x8xf32> to vector<2x8x8xf32>
    %18 = arith.subf %14, %17 : vector<2x8x8xf32>
    %19 = math.exp %18 : vector<2x8x8xf32>
    %cst_12 = arith.constant dense<0.000000e+00> : vector<2x8xf32>
    %20 = vector.multi_reduction <add>, %19, %cst_12 [1] : vector<2x8x8xf32> to vector<2x8xf32>
    %21 = vector.shape_cast %20 : vector<2x8xf32> to vector<2x1x8xf32>
    %22 = tpu.reciprocal %21 : vector<2x1x8xf32> -> vector<2x1x8xf32>
    %23 = vector.broadcast %22 : vector<2x1x8xf32> to vector<2x8x8xf32>
    %24 = arith.mulf %19, %23 : vector<2x8x8xf32>
    %cst_13 = arith.constant dense<0.000000e+00> : vector<2x8x32xf32>
    %25 = tpu.matmul %24, %0, %cst_13 {dimension_numbers = #tpu.dot_dimension_numbers<[1], [1], [2], [2], [0, 0, 0, 2, 1, 2], [0], [0]>} : vector<2x8x8xf32>, vector<2x8x32xf32>, vector<2x8x32xf32> -> vector<2x8x32xf32>
    %26 = vector.shape_cast %25 : vector<2x8x32xf32> to vector<2x256xf32>
    %c0_14 = arith.constant 0 : index
    %c0_15 = arith.constant 0 : index
    %27 = vector.load %arg6[%c0_14, %c0_15] : memref<2x256xf32, #tpu.memory_space<vmem>>, vector<2x256xf32>
    tpu.vector_store %arg6[%c0_14, %c0_15], %26 {strides = array<i32>} : memref<2x256xf32, #tpu.memory_space<vmem>>, vector<2x256xf32>,
    return
  }
  func.func @transform_0(%arg0: i32) -> (i32, i32, i32) {
    %c0_i32 = arith.constant 0 : i32
    %c0_i32_0 = arith.constant 0 : i32
    %c0_i32_1 = arith.constant 0 : i32
    return %arg0, %c0_i32, %c0_i32_0 : i32, i32, i32
  }
  func.func @transform_1(%arg0: i32) -> (i32, i32) {
    %c0_i32 = arith.constant 0 : i32
    %c0_i32_0 = arith.constant 0 : i32
    %c0_i32_1 = arith.constant 0 : i32
    return %c0_i32, %c0_i32_0 : i32, i32
  }
  func.func @transform_2(%arg0: i32) -> (i32, i32) {
    %c0_i32 = arith.constant 0 : i32
    %c0_i32_0 = arith.constant 0 : i32
    %c0_i32_1 = arith.constant 0 : i32
    return %c0_i32, %c0_i32_0 : i32, i32
  }
  func.func @transform_3(%arg0: i32) -> (i32, i32) {
    %c0_i32 = arith.constant 0 : i32
    %c0_i32_0 = arith.constant 0 : i32
    %c0_i32_1 = arith.constant 0 : i32
    return %c0_i32, %c0_i32_0 : i32, i32
  }
  func.func @transform_4(%arg0: i32) -> (i32, i32) {
    %c0_i32 = arith.constant 0 : i32
    %c0_i32_0 = arith.constant 0 : i32
    return %arg0, %c0_i32 : i32, i32
  }
  func.func @transform_5(%arg0: i32) -> (i32, i32) {
    %c0_i32 = arith.constant 0 : i32
    %c0_i32_0 = arith.constant 0 : i32
    return %arg0, %c0_i32 : i32, i32
  }
}

</mosaic_0001>

<llo_original>
// kernel: tpu_custom_call.1
$region0: #{tpu_custom_call.1}
  #allocation0 [shape = 'u32[]', space=smem, size = 0x4, offset = 0x4, fixed_abs, tag = 'smem constant byte address 0x4 - core index']
  #allocation1 [shape = 'u32[144,128]{1,0:T(1,128)}', space=vmem, size = 0x12000, scoped, tag = 'internal scratch']
  %s0 = inlined_call_operand.vmem [shape: f32[2,8,32], index: 0, kind: input, shape index: {}]
  %s1 = inlined_call_operand.vmem [shape: f32[32,16], index: 1, kind: input, shape index: {}]
  %s2 = inlined_call_operand.vmem [shape: f32[1,16], index: 2, kind: input, shape index: {}]
  %s3 = inlined_call_operand.vmem [shape: f32[16,8], index: 3, kind: input, shape index: {}]
  %s4 = inlined_call_operand.vmem [shape: f32[2,8], index: 4, kind: input, shape index: {}]
  %s5 = inlined_call_operand.hbm [shape: f32[2,256], index: 5, kind: output, shape index: {}]
  %s6 = sld [smem:[#allocation0]]
  $region30: #{tpu_custom_call.1} parent=0
    _
  %s8 = ssub.s32 1, %s6
  %s9 = scalar_select 0, %s8, %s6
  $region1: #{tpu_custom_call.1} parent=0
    #allocation2 [shape = 'u8[2048]{0}', space=vmem, size = 0x800, scoped, tag = 'output window, operand 0, single buffered']
    #allocation3 [shape = 's32[1]{0}', space=sflag, size = 0x4, scoped, tag = 'scoped memory for tpu_custom_call.1']
    %10 = vsyncpa [#allocation3], 0
    // Predicated region
    $region2: #{tpu_custom_call.1} parent=1 // pred_check
      _
    $region3: #{tpu_custom_call.1} parent=1 // pred_check_branch
      %12 = sbr.rel (0) target = $region5
    $region4: #{tpu_custom_call.1} parent=1 // pred_region
      _
    $region5: #{tpu_custom_call.1} parent=1 // pred_fallthru
      _
    // Predicated region
    $region6: #{tpu_custom_call.1} parent=1 // pred_check
      _
    $region7: #{tpu_custom_call.1} parent=1 // pred_check_branch
      %14 = sbr.rel (0) target = $region9
    $region8: #{tpu_custom_call.1} parent=1 // pred_region
      _
    $region9: #{tpu_custom_call.1} parent=1 // pred_fallthru
      _
    // Predicated region
    $region10: #{tpu_custom_call.1} parent=1 // pred_check
      _
    $region11: #{tpu_custom_call.1} parent=1 // pred_check_branch
      %16 = sbr.rel (0) target = $region13
    $region12: #{tpu_custom_call.1} parent=1 // pred_region
      _
    $region13: #{tpu_custom_call.1} parent=1 // pred_fallthru
      _
    // Predicated region
    $region14: #{tpu_custom_call.1} parent=1 // pred_check
      _
    $region15: #{tpu_custom_call.1} parent=1 // pred_check_branch
      %18 = sbr.rel (0) target = $region17
    $region16: #{tpu_custom_call.1} parent=1 // pred_region
      _
    $region17: #{tpu_custom_call.1} parent=1 // pred_fallthru
      _
    // Predicated region
    $region18: #{tpu_custom_call.1} parent=1 // pred_check
      _
    $region19: #{tpu_custom_call.1} parent=1 // pred_check_branch
      %20 = sbr.rel (0) target = $region21
    $region20: #{tpu_custom_call.1} parent=1 // pred_region
      _
    $region21: #{tpu_custom_call.1} parent=1 // pred_fallthru
      _
    %v21 = vld [vmem:[%s0] sm:$0xff]
    %v22 = vld [vmem:[%s0 + $0x8] sm:$0xff]
    %v23 = vld [vmem:[%s1] sm:$0xff]
    %v24 = vld [vmem:[%s1 + $0x8] sm:$0xff]
    %v25 = vld [vmem:[%s1 + $0x10] sm:$0xff]
    %v26 = vld [vmem:[%s1 + $0x18] sm:$0xff]
    %v27 = vld [vmem:[%s2] sm:$0x1]
    %v29 = vlaneseq
    %v30 = vshrl.u32 %v29, 7
    %v31 = vsub.s32 0, %v30
    %v32 = vrot.slane %v27, %v31
    %vm34 = vcmask 261120
    %v36 = vsel %vm34, %v21, 0
    %v39 = vsel %vm34, %v22, 0
    %41 = vmatprep.subr.mxu0 0.0
    %42 = vmatpush1.msra.mxu0 %v23
    %43 = vmatprep.subr.mxu0 0.0
    %44 = vmatpush1.msra.mxu0 %v24
    %45 = vmatprep.subr.mxu0 0.0
    %46 = vmatpush1.msra.mxu0 %v25
    %47 = vmatprep.subr.mxu0 0.0
    %48 = vmatpush1.msra.mxu0 %v26
    %49 = vmatprep.subr.mxu0 0.0
    %50 = vmatpush1.msra.mxu0 0.0
    %51 = vmatprep.subr.mxu0 0.0
    %52 = vmatpush1.msra.mxu0 0.0
    %53 = vmatprep.subr.mxu0 0.0
    %54 = vmatpush1.msra.mxu0 0.0
    %55 = vmatprep.subr.mxu0 0.0
    %56 = vmatpush1.msra.mxu0 0.0
    %57 = vmatprep.subr.mxu0 0.0
    %58 = vmatpush1.msra.mxu0 0.0
    %59 = vmatprep.subr.mxu0 0.0
    %60 = vmatpush1.msra.mxu0 0.0
    %61 = vmatprep.subr.mxu0 0.0
    %62 = vmatpush1.msra.mxu0 0.0
    %63 = vmatprep.subr.mxu0 0.0
    %64 = vmatpush1.msra.mxu0 0.0
    %65 = vmatprep.subr.mxu0 0.0
    %66 = vmatpush1.msra.mxu0 0.0
    %67 = vmatprep.subr.mxu0 0.0
    %68 = vmatpush1.msra.mxu0 0.0
    %69 = vmatprep.subr.mxu0 0.0
    %70 = vmatpush1.msra.mxu0 0.0
    %71 = vmatprep.subr.mxu0 0.0
    %72 = vmatpush1.msra.mxu0 0.0
    %73 = vmatprep.subr.mxu0 0.0
    %74 = vmatpush1.msra.mxu0 0.0
    %75 = vmatprep.subr.mxu0 0.0
    %76 = vmatpush1.msra.mxu0 0.0
    %77 = vmatprep.subr.mxu0 0.0
    %78 = vmatpush1.msra.mxu0 0.0
    %79 = vmatprep.subr.mxu0 0.0
    %80 = vmatpush1.msra.mxu0 0.0
    %81 = vmatprep.subr.mxu0 0.0
    %82 = vmatpush1.msra.mxu0 0.0
    %83 = vmatprep.subr.mxu0 0.0
    %84 = vmatpush1.msra.mxu0 0.0
    %85 = vmatprep.subr.mxu0 0.0
    %86 = vmatpush1.msra.mxu0 0.0
    %87 = vmatprep.subr.mxu0 0.0
    %88 = vmatpush1.msra.mxu0 0.0
    %89 = vmatprep.subr.mxu0 0.0
    %90 = vmatpush1.msra.mxu0 0.0
    %91 = vmatprep.subr.mxu0 0.0
    %92 = vmatpush1.msra.mxu0 0.0
    %93 = vmatprep.subr.mxu0 0.0
    %94 = vmatpush1.msra.mxu0 0.0
    %95 = vmatprep.subr.mxu0 0.0
    %96 = vmatpush1.msra.mxu0 0.0
    %97 = vmatprep.subr.mxu0 0.0
    %98 = vmatpush1.msra.mxu0 0.0
    %99 = vmatprep.subr.mxu0 0.0
    %100 = vmatpush1.msra.mxu0 0.0
    %101 = vmatprep.subr.mxu0 0.0
    %102 = vmatpush1.msra.mxu0 0.0
    %103 = vmatprep.subr.mxu0 0.0
    %104 = vmatpush1.msra.mxu0 0.0
    %105 = vmatprep.mubr.f32.mxu0 0.0
    %106 = vmatmul.mubr.f32.gmra.mrb[0].mxu0 %v36
    %v107 = vpop.f32.mrb[0].mxu0
    %v108 = vadd.f32 %v32, %v107
    %v109 = vpop.f32.mrb[0].mxu0
    %110 = vmatprep.mubr.f32.mxu0 0.0
    %111 = vmatmul.mubr.f32.gmra.mrb[0].mxu0 %v39
    %v112 = vpop.f32.mrb[0].mxu0
    %v113 = vadd.f32 %v32, %v112
    %v114 = vpop.f32.mrb[0].mxu0
    %115 = vdwg.mxu0
    %v116 = vtanh.pop %v108
    %v117 = vtanh.pop %v113
    %v118 = vld [vmem:[%s3] sm:$0xff]
    %v119 = vld [vmem:[%s3 + $0x8] sm:$0xff]
    %vm120 = vcmask 130048
    %v122 = vsel %vm120, %v116, 0
    %v125 = vsel %vm120, %v117, 0
    %127 = vmatprep.subr.mxu0 0.0
    %128 = vmatpush1.msra.mxu0 %v118
    %129 = vmatprep.subr.mxu0 0.0
    %130 = vmatpush1.msra.mxu0 %v119
    %131 = vmatprep.subr.mxu0 0.0
    %132 = vmatpush1.msra.mxu0 0.0
    %133 = vmatprep.subr.mxu0 0.0
    %134 = vmatpush1.msra.mxu0 0.0
    %135 = vmatprep.subr.mxu0 0.0
    %136 = vmatpush1.msra.mxu0 0.0
    %137 = vmatprep.subr.mxu0 0.0
    %138 = vmatpush1.msra.mxu0 0.0
    %139 = vmatprep.subr.mxu0 0.0
    %140 = vmatpush1.msra.mxu0 0.0
    %141 = vmatprep.subr.mxu0 0.0
    %142 = vmatpush1.msra.mxu0 0.0
    %143 = vmatprep.subr.mxu0 0.0
    %144 = vmatpush1.msra.mxu0 0.0
    %145 = vmatprep.subr.mxu0 0.0
    %146 = vmatpush1.msra.mxu0 0.0
    %147 = vmatprep.subr.mxu0 0.0
    %148 = vmatpush1.msra.mxu0 0.0
    %149 = vmatprep.subr.mxu0 0.0
    %150 = vmatpush1.msra.mxu0 0.0
    %151 = vmatprep.subr.mxu0 0.0
    %152 = vmatpush1.msra.mxu0 0.0
    %153 = vmatprep.subr.mxu0 0.0
    %154 = vmatpush1.msra.mxu0 0.0
    %155 = vmatprep.subr.mxu0 0.0
    %156 = vmatpush1.msra.mxu0 0.0
    %157 = vmatprep.subr.mxu0 0.0
    %158 = vmatpush1.msra.mxu0 0.0
    %159 = vmatprep.subr.mxu0 0.0
    %160 = vmatpush1.msra.mxu0 0.0
    %161 = vmatprep.subr.mxu0 0.0
    %162 = vmatpush1.msra.mxu0 0.0
    %163 = vmatprep.subr.mxu0 0.0
    %164 = vmatpush1.msra.mxu0 0.0
    %165 = vmatprep.subr.mxu0 0.0
    %166 = vmatpush1.msra.mxu0 0.0
    %167 = vmatprep.subr.mxu0 0.0
    %168 = vmatpush1.msra.mxu0 0.0
    %169 = vmatprep.subr.mxu0 0.0
    %170 = vmatpush1.msra.mxu0 0.0
    %171 = vmatprep.subr.mxu0 0.0
    %172 = vmatpush1.msra.mxu0 0.0
    %173 = vmatprep.subr.mxu0 0.0
    %174 = vmatpush1.msra.mxu0 0.0
    %175 = vmatprep.subr.mxu0 0.0
    %176 = vmatpush1.msra.mxu0 0.0
    %177 = vmatprep.subr.mxu0 0.0
    %178 = vmatpush1.msra.mxu0 0.0
    %179 = vmatprep.subr.mxu0 0.0
    %180 = vmatpush1.msra.mxu0 0.0
    %181 = vmatprep.subr.mxu0 0.0
    %182 = vmatpush1.msra.mxu0 0.0
    %183 = vmatprep.subr.mxu0 0.0
    %184 = vmatpush1.msra.mxu0 0.0
    %185 = vmatprep.subr.mxu0 0.0
    %186 = vmatpush1.msra.mxu0 0.0
    %187 = vmatprep.subr.mxu0 0.0
    %188 = vmatpush1.msra.mxu0 0.0
    %189 = vmatprep.subr.mxu0 0.0
    %190 = vmatpush1.msra.mxu0 0.0
    %191 = vmatprep.mubr.f32.mxu0 0.0
    %192 = vmatmul.mubr.f32.gmra.mrb[0].mxu0 %v122
    %v193 = vpop.f32.mrb[0].mxu0
    %v194 = vadd.f32 0.0, %v193
    %v195 = vpop.f32.mrb[0].mxu0
    %196 = vmatprep.mubr.f32.mxu0 0.0
    %197 = vmatmul.mubr.f32.gmra.mrb[0].mxu0 %v125
    %v198 = vpop.f32.mrb[0].mxu0
    %v199 = vadd.f32 0.0, %v198
    %v200 = vpop.f32.mrb[0].mxu0
    %201 = vdwg.mxu0
    %v202 = vld [vmem:[%s4] sm:$0x3]
    %v203 = vlaneseq
    %v204 = vshrl.u32 %v203, 7
    %v205 = vsub.s32 0, %v204
    %v206 = vrot.slane %v202, %v205
    %208 = vbcast.lane.b32.xlu0 %v206, 256
    %v209 = vpop.permute.xlu0 %208
    %v210 = vlaneseq
    %v211 = vshrl.u32 %v210, 7
    %v212 = vsub.s32 1, %v211
    %v213 = vrot.slane %v202, %v212
    %215 = vbcast.lane.b32.xlu0 %v213, 256
    %v216 = vpop.permute.xlu0 %215
    %v217 = vadd.f32 %v194, %v209
    %v218 = vadd.f32 %v199, %v216
    %vm219 = vcmask 64512
    %v220 = vsel %vm219, %v217, -inf
    %v221 = vrot.slane %v220, 4
    %v222 = vmax.f32 %v220, %v221
    %v223 = vrot.slane %v222, 2
    %v224 = vmax.f32 %v222, %v223
    %v225 = vrot.slane %v224, 1
    %v226 = vmax.f32 %v224, %v225
    %v227 = vsel %vm219, %v218, -inf
    %v228 = vrot.slane %v227, 4
    %v229 = vmax.f32 %v227, %v228
    %v230 = vrot.slane %v229, 2
    %v231 = vmax.f32 %v229, %v230
    %v232 = vrot.slane %v231, 1
    %v233 = vmax.f32 %v231, %v232
    %v234 = vsub.f32 %v217, %v226
    %v235 = vsub.f32 %v218, %v233
    %v236 = vmul.f32 %v234, 1.442695
    %v237 = vpow.pop %v236
    %v238 = vmul.f32 %v235, 1.442695
    %v239 = vpow.pop %v238
    %v240 = vsel %vm219, %v237, 0.0
    %v241 = vrot.slane %v240, 4
    %v242 = vadd.f32 %v240, %v241
    %v243 = vrot.slane %v242, 2
    %v244 = vadd.f32 %v242, %v243
    %v245 = vrot.slane %v244, 1
    %v246 = vadd.f32 %v244, %v245
    %v247 = vsel %vm219, %v239, 0.0
    %v248 = vrot.slane %v247, 4
    %v249 = vadd.f32 %v247, %v248
    %v250 = vrot.slane %v249, 2
    %v251 = vadd.f32 %v249, %v250
    %v252 = vrot.slane %v251, 1
    %v253 = vadd.f32 %v251, %v252
    %v254 = vrcp.pop %v246
    %v255 = vrcp.pop %v253
    %v256 = vmul.f32 %v237, %v254
    %v257 = vmul.f32 %v239, %v255
    %258 = vxpose.xlu0.b32.start [1/16] %v256, 128
    %259 = vxpose.xlu0.b32.cont [2/16] 0.0, 128
    %260 = vxpose.xlu0.b32.cont [3/16] 0.0, 128
    %261 = vxpose.xlu0.b32.cont [4/16] 0.0, 128
    %262 = vxpose.xlu0.b32.cont [5/16] 0.0, 128
    %263 = vxpose.xlu0.b32.cont [6/16] 0.0, 128
    %264 = vxpose.xlu0.b32.cont [7/16] 0.0, 128
    %265 = vxpose.xlu0.b32.cont [8/16] 0.0, 128
    %266 = vxpose.xlu0.b32.cont [9/16] 0.0, 128
    %267 = vxpose.xlu0.b32.cont [10/16] 0.0, 128
    %268 = vxpose.xlu0.b32.cont [11/16] 0.0, 128
    %269 = vxpose.xlu0.b32.cont [12/16] 0.0, 128
    %270 = vxpose.xlu0.b32.cont [13/16] 0.0, 128
    %271 = vxpose.xlu0.b32.cont [14/16] 0.0, 128
    %272 = vxpose.xlu0.b32.cont [15/16] 0.0, 128
    %273 = vxpose.xlu0.b32.end [16/16] 0.0, 128
    %v274 = vpop.trf.xlu0
    %v275 = vpop.trf.xlu0
    %v276 = vpop.trf.xlu0
    %v277 = vpop.trf.xlu0
    %v278 = vpop.trf.xlu0
    %v279 = vpop.trf.xlu0
    %v280 = vpop.trf.xlu0
    %v281 = vpop.trf.xlu0
    %v282 = vpop.trf.xlu0
    %v283 = vpop.trf.xlu0
    %v284 = vpop.trf.xlu0
    %v285 = vpop.trf.xlu0
    %v286 = vpop.trf.xlu0
    %v287 = vpop.trf.xlu0
    %v288 = vpop.trf.xlu0
    %v289 = vpop.trf.xlu0
    %v291 = vsel %vm219, %v274, 0
    %293 = vmatprep.subr.mxu0 0.0
    %294 = vmatpush1.msra.mxu0 %v21
    %295 = vmatprep.subr.mxu0 0.0
    %296 = vmatpush1.msra.mxu0 0.0
    %297 = vmatprep.subr.mxu0 0.0
    %298 = vmatpush1.msra.mxu0 0.0
    %299 = vmatprep.subr.mxu0 0.0
    %300 = vmatpush1.msra.mxu0 0.0
    %301 = vmatprep.subr.mxu0 0.0
    %302 = vmatpush1.msra.mxu0 0.0
    %303 = vmatprep.subr.mxu0 0.0
    %304 = vmatpush1.msra.mxu0 0.0
    %305 = vmatprep.subr.mxu0 0.0
    %306 = vmatpush1.msra.mxu0 0.0
    %307 = vmatprep.subr.mxu0 0.0
    %308 = vmatpush1.msra.mxu0 0.0
    %309 = vmatprep.subr.mxu0 0.0
    %310 = vmatpush1.msra.mxu0 0.0
    %311 = vmatprep.subr.mxu0 0.0
    %312 = vmatpush1.msra.mxu0 0.0
    %313 = vmatprep.subr.mxu0 0.0
    %314 = vmatpush1.msra.mxu0 0.0
    %315 = vmatprep.subr.mxu0 0.0
    %316 = vmatpush1.msra.mxu0 0.0
    %317 = vmatprep.subr.mxu0 0.0
    %318 = vmatpush1.msra.mxu0 0.0
    %319 = vmatprep.subr.mxu0 0.0
    %320 = vmatpush1.msra.mxu0 0.0
    %321 = vmatprep.subr.mxu0 0.0
    %322 = vmatpush1.msra.mxu0 0.0
    %323 = vmatprep.subr.mxu0 0.0
    %324 = vmatpush1.msra.mxu0 0.0
    %325 = vmatprep.subr.mxu0 0.0
    %326 = vmatpush1.msra.mxu0 0.0
    %327 = vmatprep.subr.mxu0 0.0
    %328 = vmatpush1.msra.mxu0 0.0
    %329 = vmatprep.subr.mxu0 0.0
    %330 = vmatpush1.msra.mxu0 0.0
    %331 = vmatprep.subr.mxu0 0.0
    %332 = vmatpush1.msra.mxu0 0.0
    %333 = vmatprep.subr.mxu0 0.0
    %334 = vmatpush1.msra.mxu0 0.0
    %335 = vmatprep.subr.mxu0 0.0
    %336 = vmatpush1.msra.mxu0 0.0
    %337 = vmatprep.subr.mxu0 0.0
    %338 = vmatpush1.msra.mxu0 0.0
    %339 = vmatprep.subr.mxu0 0.0
    %340 = vmatpush1.msra.mxu0 0.0
    %341 = vmatprep.subr.mxu0 0.0
    %342 = vmatpush1.msra.mxu0 0.0
    %343 = vmatprep.subr.mxu0 0.0
    %344 = vmatpush1.msra.mxu0 0.0
    %345 = vmatprep.subr.mxu0 0.0
    %346 = vmatpush1.msra.mxu0 0.0
    %347 = vmatprep.subr.mxu0 0.0
    %348 = vmatpush1.msra.mxu0 0.0
    %349 = vmatprep.subr.mxu0 0.0
    %350 = vmatpush1.msra.mxu0 0.0
    %351 = vmatprep.subr.mxu0 0.0
    %352 = vmatpush1.msra.mxu0 0.0
    %353 = vmatprep.subr.mxu0 0.0
    %354 = vmatpush1.msra.mxu0 0.0
    %355 = vmatprep.subr.mxu0 0.0
    %356 = vmatpush1.msra.mxu0 0.0
    %357 = vmatprep.mubr.f32.mxu0 0.0
    %358 = vmatmul.mubr.f32.gmra.mrb[0].mxu0 %v291
    %v359 = vpop.f32.mrb[0].mxu0
    %v360 = vadd.f32 0.0, %v359
    %v361 = vpop.f32.mrb[0].mxu0
    %362 = vdwg.mxu0
    %363 = vxpose.xlu0.b32.start [1/16] %v257, 128
    %364 = vxpose.xlu0.b32.cont [2/16] 0.0, 128
    %365 = vxpose.xlu0.b32.cont [3/16] 0.0, 128
    %366 = vxpose.xlu0.b32.cont [4/16] 0.0, 128
    %367 = vxpose.xlu0.b32.cont [5/16] 0.0, 128
    %368 = vxpose.xlu0.b32.cont [6/16] 0.0, 128
    %369 = vxpose.xlu0.b32.cont [7/16] 0.0, 128
    %370 = vxpose.xlu0.b32.cont [8/16] 0.0, 128
    %371 = vxpose.xlu0.b32.cont [9/16] 0.0, 128
    %372 = vxpose.xlu0.b32.cont [10/16] 0.0, 128
    %373 = vxpose.xlu0.b32.cont [11/16] 0.0, 128
    %374 = vxpose.xlu0.b32.cont [12/16] 0.0, 128
    %375 = vxpose.xlu0.b32.cont [13/16] 0.0, 128
    %376 = vxpose.xlu0.b32.cont [14/16] 0.0, 128
    %377 = vxpose.xlu0.b32.cont [15/16] 0.0, 128
    %378 = vxpose.xlu0.b32.end [16/16] 0.0, 128
    %v379 = vpop.trf.xlu0
    %v380 = vpop.trf.xlu0
    %v381 = vpop.trf.xlu0
    %v382 = vpop.trf.xlu0
    %v383 = vpop.trf.xlu0
    %v384 = vpop.trf.xlu0
    %v385 = vpop.trf.xlu0
    %v386 = vpop.trf.xlu0
    %v387 = vpop.trf.xlu0
    %v388 = vpop.trf.xlu0
    %v389 = vpop.trf.xlu0
    %v390 = vpop.trf.xlu0
    %v391 = vpop.trf.xlu0
    %v392 = vpop.trf.xlu0
    %v393 = vpop.trf.xlu0
    %v394 = vpop.trf.xlu0
    %v396 = vsel %vm219, %v379, 0
    %398 = vmatprep.subr.mxu0 0.0
    %399 = vmatpush1.msra.mxu0 %v22
    %400 = vmatprep.subr.mxu0 0.0
    %401 = vmatpush1.msra.mxu0 0.0
    %402 = vmatprep.subr.mxu0 0.0
    %403 = vmatpush1.msra.mxu0 0.0
    %404 = vmatprep.subr.mxu0 0.0
    %405 = vmatpush1.msra.mxu0 0.0
    %406 = vmatprep.subr.mxu0 0.0
    %407 = vmatpush1.msra.mxu0 0.0
    %408 = vmatprep.subr.mxu0 0.0
    %409 = vmatpush1.msra.mxu0 0.0
    %410 = vmatprep.subr.mxu0 0.0
    %411 = vmatpush1.msra.mxu0 0.0
    %412 = vmatprep.subr.mxu0 0.0
    %413 = vmatpush1.msra.mxu0 0.0
    %414 = vmatprep.subr.mxu0 0.0
    %415 = vmatpush1.msra.mxu0 0.0
    %416 = vmatprep.subr.mxu0 0.0
    %417 = vmatpush1.msra.mxu0 0.0
    %418 = vmatprep.subr.mxu0 0.0
    %419 = vmatpush1.msra.mxu0 0.0
    %420 = vmatprep.subr.mxu0 0.0
    %421 = vmatpush1.msra.mxu0 0.0
    %422 = vmatprep.subr.mxu0 0.0
    %423 = vmatpush1.msra.mxu0 0.0
    %424 = vmatprep.subr.mxu0 0.0
    %425 = vmatpush1.msra.mxu0 0.0
    %426 = vmatprep.subr.mxu0 0.0
    %427 = vmatpush1.msra.mxu0 0.0
    %428 = vmatprep.subr.mxu0 0.0
    %429 = vmatpush1.msra.mxu0 0.0
    %430 = vmatprep.subr.mxu0 0.0
    %431 = vmatpush1.msra.mxu0 0.0
    %432 = vmatprep.subr.mxu0 0.0
    %433 = vmatpush1.msra.mxu0 0.0
    %434 = vmatprep.subr.mxu0 0.0
    %435 = vmatpush1.msra.mxu0 0.0
    %436 = vmatprep.subr.mxu0 0.0
    %437 = vmatpush1.msra.mxu0 0.0
    %438 = vmatprep.subr.mxu0 0.0
    %439 = vmatpush1.msra.mxu0 0.0
    %440 = vmatprep.subr.mxu0 0.0
    %441 = vmatpush1.msra.mxu0 0.0
    %442 = vmatprep.subr.mxu0 0.0
    %443 = vmatpush1.msra.mxu0 0.0
    %444 = vmatprep.subr.mxu0 0.0
    %445 = vmatpush1.msra.mxu0 0.0
    %446 = vmatprep.subr.mxu0 0.0
    %447 = vmatpush1.msra.mxu0 0.0
    %448 = vmatprep.subr.mxu0 0.0
    %449 = vmatpush1.msra.mxu0 0.0
    %450 = vmatprep.subr.mxu0 0.0
    %451 = vmatpush1.msra.mxu0 0.0
    %452 = vmatprep.subr.mxu0 0.0
    %453 = vmatpush1.msra.mxu0 0.0
    %454 = vmatprep.subr.mxu0 0.0
    %455 = vmatpush1.msra.mxu0 0.0
    %456 = vmatprep.subr.mxu0 0.0
    %457 = vmatpush1.msra.mxu0 0.0
    %458 = vmatprep.subr.mxu0 0.0
    %459 = vmatpush1.msra.mxu0 0.0
    %460 = vmatprep.subr.mxu0 0.0
    %461 = vmatpush1.msra.mxu0 0.0
    %462 = vmatprep.mubr.f32.mxu0 0.0
    %463 = vmatmul.mubr.f32.gmra.mrb[0].mxu0 %v396
    %v464 = vpop.f32.mrb[0].mxu0
    %v465 = vadd.f32 0.0, %v464
    %v466 = vpop.f32.mrb[0].mxu0
    %467 = vdwg.mxu0
    %v468 = vcombine.high %v360, 0.0
    %v470 = vunpack.c.l.s4 1983009808
    %v471 = vunpack.c.0.s8 %v470
    %v472 = vlaneseq
    %v473 = vshrl.u32 %v472, 7
    %v474 = vsub.s32 %v471, %v473
    %v475 = vrot.slane %v360, %v474
    %v477 = vunpack.c.l.s4 1983009808
    %v478 = vunpack.c.0.s8 %v477
    %v479 = vlaneseq
    %v480 = vshrl.u32 %v479, 7
    %v481 = vsub.s32 %v478, %v480
    %v482 = vrot.slane %v468, %v481
    %v483 = vcombine.high %v465, 0.0
    %v485 = vunpack.c.l.s4 1983009808
    %v486 = vunpack.c.0.s8 %v485
    %v487 = vlaneseq
    %v488 = vshrl.u32 %v487, 7
    %v489 = vsub.s32 %v486, %v488
    %v490 = vrot.slane %v465, %v489
    %v492 = vunpack.c.l.s4 1983009808
    %v493 = vunpack.c.0.s8 %v492
    %v494 = vlaneseq
    %v495 = vshrl.u32 %v494, 7
    %v496 = vsub.s32 %v493, %v495
    %v497 = vrot.slane %v483, %v496
    %v498 = vcombine.low %v475, %v490
    %v499 = vcombine.high %v475, %v490
    %v501 = vunpack.c.l.s4 1934713408
    %v502 = vunpack.c.0.s8 %v501
    %v503 = vlaneseq
    %v504 = vshrl.u32 %v503, 7
    %v505 = vsub.s32 %v502, %v504
    %v506 = vrot.slane %v498, %v505
    %v508 = vunpack.c.l.s4 1934713408
    %v509 = vunpack.c.0.s8 %v508
    %v510 = vlaneseq
    %v511 = vshrl.u32 %v510, 7
    %v512 = vsub.s32 %v509, %v511
    %v513 = vrot.slane %v499, %v512
    %v514 = vcombine.low %v482, %v497
    %v515 = vcombine.high %v482, %v497
    %v517 = vunpack.c.l.s4 1934713408
    %v518 = vunpack.c.0.s8 %v517
    %v519 = vlaneseq
    %v520 = vshrl.u32 %v519, 7
    %v521 = vsub.s32 %v518, %v520
    %v522 = vrot.slane %v514, %v521
    %v524 = vunpack.c.l.s4 1934713408
    %v525 = vunpack.c.0.s8 %v524
    %v526 = vlaneseq
    %v527 = vshrl.u32 %v526, 7
    %v528 = vsub.s32 %v525, %v527
    %v529 = vrot.slane %v515, %v528
    %v530 = vcombine.high %v506, 0.0
    %v531 = vcombine.high %v513, 0.0
    %v532 = vcombine.high %v522, 0.0
    %v533 = vcombine.high %v529, 0.0
    %535 = vrot.lane.b32.xlu0 %v530, 32
    %v536 = vpop.permute.xlu0 %535
    %539 = vrot.lane.b32.xlu0 %v513, 64
    %v540 = vpop.permute.xlu0 %539
    %543 = vrot.lane.b32.xlu0 %v531, 96
    %v544 = vpop.permute.xlu0 %543
    %547 = vrot.lane.b32.xlu0 %v532, 32
    %v548 = vpop.permute.xlu0 %547
    %551 = vrot.lane.b32.xlu0 %v529, 64
    %v552 = vpop.permute.xlu0 %551
    %555 = vrot.lane.b32.xlu0 %v533, 96
    %v556 = vpop.permute.xlu0 %555
    %v558 = vsel %vm34, %v506, %v536
    %vm559 = vcmask 523264
    %v560 = vsel %vm559, %v558, %v540
    %vm561 = vcmask 785408
    %v562 = vsel %vm561, %v560, %v544
    %v563 = vsel %vm34, %v522, %v548
    %v564 = vsel %vm559, %v563, %v552
    %v565 = vsel %vm561, %v564, %v556
    %v568 = vcombine.low %v562, %v565
    %v570 = vunpack.c.l.s4 1983009808
    %v571 = vunpack.c.0.s8 %v570
    %v572 = vlaneseq
    %v573 = vshrl.u32 %v572, 7
    %v574 = vsub.s32 %v571, %v573
    %v575 = vrot.slane %v568, %v574
    %577 = vst [vmem:[#allocation2] sm:$0xf] %v575
    // Predicated region
    $region22: #{tpu_custom_call.1} parent=1 // pred_check
      _
    $region23: #{tpu_custom_call.1} parent=1 // pred_check_branch
      %579 = sbr.rel (0) target = $region25
    $region24: #{tpu_custom_call.1} parent=1 // pred_region
      %s581 = ssub.s32 64, 64
      %582 = vsyncadd [#allocation3], %s581
      %s584 = sshll.u32 [#allocation2], 4
      %s585 = int_to_ptr.vmem [resolvable:$true] %s584
      %587 = dma.vmem_to_hbm [thread:$0]  %s585, 64, %s5, [#allocation3]
    $region25: #{tpu_custom_call.1} parent=1 // pred_fallthru
      _
    // Predicated region
    $region26: #{tpu_custom_call.1} parent=1 // pred_check
      _
    $region27: #{tpu_custom_call.1} parent=1 // pred_check_branch
      %589 = sbr.rel (0) target = $region29
    $region28: #{tpu_custom_call.1} parent=1 // pred_region
      %590 = dma.done [#allocation3], 64
    $region29: #{tpu_custom_call.1} parent=1 // pred_fallthru
      _
    %591 = vsyncpa [#allocation3], 1

</llo_original>
